<compile_context>
chip_gen: v7x
topology: tpu7x:2x2x1
jax: 0.10.0
libtpu: 0.0.40
codegen_flags: <defaults>
</compile_context>

<pallas_src>
import functools
import numpy as np
import jax
import jax.numpy as jnp
from jax.experimental import pallas as pl
from jax.experimental.pallas import tpu as pltpu

BF16 = jnp.bfloat16
CHAR_HID = 128   # CharLstmModel hidden_size (bidirectional -> 256-dim word reps)
WORD_HID = 256   # final nn.LSTM hidden_size (2 layers, bidirectional -> 512)


def _round_up(x, m):
    return ((x + m - 1) // m) * m


# ----------------------------------------------------------------------------
# Kernel 1: per-sentence BERT word merge (avg, f32) fused with the concat.
#   merged[b] = A[b] @ E[b]   (A holds 1/len(split) weights, CLS/SEP excluded)
#   x[b]      = [ charlstm[b] | merged[b] ]   written directly in bf16.
# ----------------------------------------------------------------------------
def _prep_kernel(split_ref, bert_ref, char_ref, x_ref, merged_ref):
    merged = jnp.dot(split_ref[0], bert_ref[0],
                     preferred_element_type=jnp.float32)          # (W, D) f32
    merged_ref[0] = merged
    c = char_ref.shape[-1]
    x_ref[0, :, :c] = char_ref[0].astype(x_ref.dtype)
    x_ref[0, :, c:] = merged.astype(x_ref.dtype)


def prep_inputs(split_f32, bert_f32, char_enc):
    B, W, S = split_f32.shape
    D = bert_f32.shape[-1]
    C = char_enc.shape[-1]
    return pl.pallas_call(
        _prep_kernel,
        out_shape=(jax.ShapeDtypeStruct((B, W, C + D), BF16),
                   jax.ShapeDtypeStruct((B, W, D), jnp.float32)),
        grid_spec=pltpu.PrefetchScalarGridSpec(
            num_scalar_prefetch=0,
            grid=(B,),
            in_specs=[
                pl.BlockSpec((1, W, S), lambda b: (b, 0, 0)),
                pl.BlockSpec((1, S, D), lambda b: (b, 0, 0)),
                pl.BlockSpec((1, W, C), lambda b: (b, 0, 0)),
            ],
            out_specs=[
                pl.BlockSpec((1, W, C + D), lambda b: (b, 0, 0)),
                pl.BlockSpec((1, W, D), lambda b: (b, 0, 0)),
            ]),
        compiler_params=pltpu.CompilerParams(dimension_semantics=("parallel",)),
    )(split_f32, bert_f32, char_enc)


# ----------------------------------------------------------------------------
# Kernel 2: row-tiled gate projections (hoisted LSTM input matmuls).
#   gates = sum_i x_i @ W_i + b, emitted as two bf16 halves [fwd 4H | bwd 4H].
# ----------------------------------------------------------------------------
def _gates1_kernel(x_ref, w_ref, b_ref, of_ref, ob_ref):
    g = jnp.dot(x_ref[...].astype(BF16), w_ref[...],
                preferred_element_type=jnp.float32) + b_ref[...]
    G = g.shape[-1] // 2
    of_ref[...] = g[:, :G].astype(of_ref.dtype)
    ob_ref[...] = g[:, G:].astype(ob_ref.dtype)


def _gates2_kernel(xf_ref, xb_ref, wf_ref, wb_ref, b_ref, of_ref, ob_ref):
    g = (jnp.dot(xf_ref[...].astype(BF16), wf_ref[...],
                 preferred_element_type=jnp.float32)
         + jnp.dot(xb_ref[...].astype(BF16), wb_ref[...],
                   preferred_element_type=jnp.float32)
         + b_ref[...])
    G = g.shape[-1] // 2
    of_ref[...] = g[:, :G].astype(of_ref.dtype)
    ob_ref[...] = g[:, G:].astype(ob_ref.dtype)


def _row_tiles(rows, tile_m=512):
    tm = min(tile_m, _round_up(max(rows, 8), 8))
    rows_p = _round_up(max(rows, 8), tm)
    return tm, rows_p


def _pad_rows(x, rows_p):
    r = x.shape[0]
    if r == rows_p:
        return x
    return jnp.pad(x, ((0, rows_p - r),) + ((0, 0),) * (x.ndim - 1))


def gate_proj(xs, ws, b, out_dtype=BF16, tile_m=512):
    rows = xs[0].shape[0]
    tm, rows_p = _row_tiles(rows, tile_m)
    dout = ws[0].shape[1]
    G = dout // 2
    xs_p = [_pad_rows(x, rows_p) for x in xs]
    kernel = _gates1_kernel if len(xs) == 1 else _gates2_kernel
    in_specs = ([pl.BlockSpec((tm, x.shape[1]), lambda i: (i, 0)) for x in xs_p]
                + [pl.BlockSpec((w.shape[0], dout), lambda i: (0, 0)) for w in ws]
                + [pl.BlockSpec((1, dout), lambda i: (0, 0))])
    of, ob = pl.pallas_call(
        kernel,
        out_shape=(jax.ShapeDtypeStruct((rows_p, G), out_dtype),
                   jax.ShapeDtypeStruct((rows_p, G), out_dtype)),
        grid_spec=pltpu.PrefetchScalarGridSpec(
            num_scalar_prefetch=0,
            grid=(rows_p // tm,),
            in_specs=in_specs,
            out_specs=[pl.BlockSpec((tm, G), lambda i: (i, 0)),
                       pl.BlockSpec((tm, G), lambda i: (i, 0))]),
        compiler_params=pltpu.CompilerParams(dimension_semantics=("parallel",)),
    )(*xs_p, *ws, b)
    return of, ob


# ----------------------------------------------------------------------------
# Kernel 3: final lane-dense Linear (out_dim padded to 128 lanes).
# ----------------------------------------------------------------------------
def _dense_kernel(x_ref, w_ref, b_ref, o_ref):
    o_ref[...] = (jnp.dot(x_ref[...].astype(BF16), w_ref[...],
                          preferred_element_type=jnp.float32) + b_ref[...])


def dense(x2d, w_bf16, b_f32, tile_m=512):
    rows, din = x2d.shape
    dout = w_bf16.shape[1]
    tm, rows_p = _row_tiles(rows, tile_m)
    x_p = _pad_rows(x2d, rows_p)
    out = pl.pallas_call(
        _dense_kernel,
        out_shape=jax.ShapeDtypeStruct((rows_p, dout), jnp.float32),
        grid_spec=pltpu.PrefetchScalarGridSpec(
            num_scalar_prefetch=0,
            grid=(rows_p // tm,),
            in_specs=[pl.BlockSpec((tm, din), lambda i: (i, 0)),
                      pl.BlockSpec((din, dout), lambda i: (0, 0)),
                      pl.BlockSpec((1, dout), lambda i: (0, 0))],
            out_specs=pl.BlockSpec((tm, dout), lambda i: (i, 0))),
        compiler_params=pltpu.CompilerParams(dimension_semantics=("parallel",)),
    )(x_p, w_bf16, b_f32)
    return out[:rows]


# ----------------------------------------------------------------------------
# Kernel 4: batch-tiled bidirectional LSTM recurrence, fwd/bwd interleaved.
#   gxf/gxb : (T, Np, 4H) bf16 precomputed input gates (bias folded),
#             gate column order (i, f, o, g).
#   lens    : (Np, 1) int32 true sequence lengths (0 for padded rows).
#   whh     : (2, H, 4H) bf16 recurrent weights [fwd, bwd].
#   outputs : of/ob (T, Np, H) f32 (padded steps emit zeros, state frozen).
# ----------------------------------------------------------------------------
def _bilstm_kernel(gxf_ref, gxb_ref, lens_ref, whh_ref, of_ref, ob_ref, *,
                   unroll):
    T, TN, G4 = gxf_ref.shape
    H = G4 // 4
    lens = lens_ref[...]                                  # (TN, 1) int32

    def cell(gates, c):
        sig = jax.nn.sigmoid(gates[:, :3 * H])            # one contiguous EUP slab
        i_g = sig[:, 0 * H:1 * H]
        f_g = sig[:, 1 * H:2 * H]
        o_g = sig[:, 2 * H:3 * H]
        g_g = jnp.tanh(gates[:, 3 * H:])
        c_new = f_g * c + i_g * g_g
        h_new = o_g * jnp.tanh(c_new)
        return h_new, c_new

    def step(t, carry):
        hf, cf, hb, cb = carry
        tb = T - 1 - t
        gf = gxf_ref[t].astype(jnp.float32) + jnp.dot(
            hf.astype(BF16), whh_ref[0], preferred_element_type=jnp.float32)
        gb = gxb_ref[tb].astype(jnp.float32) + jnp.dot(
            hb.astype(BF16), whh_ref[1], preferred_element_type=jnp.float32)
        hf_n, cf_n = cell(gf, cf)
        hb_n, cb_n = cell(gb, cb)
        vf = jnp.broadcast_to(t < lens, (TN, H))          # hoisted, reused 3x
        vb = jnp.broadcast_to(tb < lens, (TN, H))
        of_ref[t] = jnp.where(vf, hf_n, 0.0)
        ob_ref[tb] = jnp.where(vb, hb_n, 0.0)
        return (jnp.where(vf, hf_n, hf), jnp.where(vf, cf_n, cf),
                jnp.where(vb, hb_n, hb), jnp.where(vb, cb_n, cb))

    z = jnp.zeros((TN, H), jnp.float32)
    jax.lax.fori_loop(0, T, step, (z, z, z, z), unroll=unroll)


def _lstm_tiles(n_rows, T, H, budget=12 << 20):
    # double-buffered gx (bf16, 8H/row/step) + out (f32, 2H/row/step) per tile;
    # 12 MiB keeps it under even v5e's 16 MiB default scoped-VMEM limit.
    per_row = 2 * T * (8 * H * 2 + 2 * H * 4)
    cap = max(8, ((budget // max(per_row, 1)) // 8) * 8)
    n8 = _round_up(max(n_rows, 8), 8)
    tn = int(min(cap, 256, n8))
    return tn, _round_up(n8, tn)


def bilstm(gxf, gxb, lens_col, whh, tn, unroll):
    T, Np, G4 = gxf.shape
    H = whh.shape[1]
    kernel = functools.partial(_bilstm_kernel, unroll=unroll)
    return pl.pallas_call(
        kernel,
        out_shape=(jax.ShapeDtypeStruct((T, Np, H), jnp.float32),
                   jax.ShapeDtypeStruct((T, Np, H), jnp.float32)),
        grid_spec=pltpu.PrefetchScalarGridSpec(
            num_scalar_prefetch=0,
            grid=(Np // tn,),
            in_specs=[
                pl.BlockSpec((T, tn, G4), lambda n: (0, n, 0)),
                pl.BlockSpec((T, tn, G4), lambda n: (0, n, 0)),
                pl.BlockSpec((tn, 1), lambda n: (n, 0)),
                pl.BlockSpec((2, H, G4), lambda n: (0, 0, 0)),
            ],
            out_specs=[pl.BlockSpec((T, tn, H), lambda n: (0, n, 0)),
                       pl.BlockSpec((T, tn, H), lambda n: (0, n, 0))]),
        compiler_params=pltpu.CompilerParams(dimension_semantics=("parallel",)),
    )(gxf, gxb, lens_col, whh)


# ----------------------------------------------------------------------------
# Parameter init (deterministic, synthetic).  Shapes follow the nn.Module.
# When importing real PyTorch weights: transpose weight_ih/hh to (in, 4H),
# permute gate columns (i,f,g,o) -> (i,f,o,g), sum bias_ih + bias_hh, and
# concatenate [fwd | bwd] along the output axis of *_wih / *_b.
# ----------------------------------------------------------------------------
def init_params(key, nchars, char_emb_dim, bert_dim, out_dim):
    scale = 0.05
    k = key

    def nxt():
        nonlocal k
        k, sub = jax.random.split(k)
        return sub

    def rnd(shape):
        return scale * jax.random.normal(nxt(), shape, jnp.float32)

    params = {}
    emb = rnd((nchars, char_emb_dim))
    params["emb"] = emb.at[0].set(0.0)                 # padding_idx = 0

    cfg = (("c0", char_emb_dim, CHAR_HID),
           ("l0", 2 * CHAR_HID + bert_dim, WORD_HID),
           ("l1", 2 * WORD_HID, WORD_HID))
    for name, din, h in cfg:
        params[f"{name}_wih"] = rnd((din, 8 * h)).astype(BF16)   # [fwd 4H|bwd 4H]
        params[f"{name}_b"] = rnd((1, 8 * h))                    # folded ih+hh bias
        params[f"{name}_whh"] = rnd((2, h, 4 * h)).astype(BF16)  # [fwd, bwd]

    lanes = _round_up(out_dim, 128)                    # lane-dense padded output
    lw = jnp.zeros((2 * WORD_HID, lanes), jnp.float32)
    lw = lw.at[:, :out_dim].set(rnd((2 * WORD_HID, out_dim)))
    lb = jnp.zeros((1, lanes), jnp.float32).at[:, :out_dim].set(rnd((1, out_dim)))
    params["lin_w"] = lw.astype(BF16)
    params["lin_b"] = lb
    return params


# ----------------------------------------------------------------------------
# Full forward (Pallas for all hot paths; tiny gathers / reshapes in XLA).
# ----------------------------------------------------------------------------
def forward(params, bert_encodings, split_mat, char_ids, char_lens, lengths,
            out_dim, targets=None):
    B, S, _D = bert_encodings.shape
    W, Cmax = char_ids.shape[1], char_ids.shape[2]
    NW = B * W
    Hc, H = CHAR_HID, WORD_HID

    # --- representation-1: char BiLSTM ('end') over each word's characters ---
    tn_c, NWp = _lstm_tiles(NW, Cmax, Hc)
    ids_tm = jnp.transpose(char_ids.reshape(NW, Cmax), (1, 0))       # (Cmax, NW)
    ids_tm = jnp.pad(ids_tm, ((0, 0), (0, NWp - NW)))                # pad idx 0
    embs_tm = params["emb"][ids_tm]                                   # XLA gather
    gcf, gcb = gate_proj([embs_tm.reshape(Cmax * NWp, -1)],
                         [params["c0_wih"]], params["c0_b"])
    lens_w = char_lens.reshape(NW).astype(jnp.int32)
    lens_w_p = jnp.pad(lens_w, (0, NWp - NW)).reshape(NWp, 1)
    cof, cob = bilstm(gcf.reshape(Cmax, NWp, 4 * Hc),
                      gcb.reshape(Cmax, NWp, 4 * Hc),
                      lens_w_p, params["c0_whh"],
                      tn=tn_c, unroll=Cmax if Cmax <= 16 else 4)
    last_c = jnp.maximum(lens_w, 1) - 1
    rows = jnp.arange(NW)
    char_end = jnp.concatenate([cof[last_c, rows], cob[last_c, rows]], axis=-1)
    word_mask = jnp.arange(W)[None, :] < lengths[:, None]             # (B, W)
    charlstm_enc = (char_end.reshape(B, W, 2 * Hc)
                    * word_mask[:, :, None].astype(jnp.float32))      # (B, W, 256)

    # --- representation-2: BERT word merge (avg) fused with concat [Pallas] ---
    x_bw, merged = prep_inputs(split_mat, bert_encodings, charlstm_enc)

    # --- 2-layer bidirectional word LSTM, packed-sequence semantics [Pallas] ---
    tn_w, Bp = _lstm_tiles(B, W, H)
    x_tm = jnp.transpose(x_bw, (1, 0, 2))                             # (W, B, Din0) bf16
    x_tm = jnp.pad(x_tm, ((0, 0), (0, Bp - B), (0, 0)))
    lens_b = jnp.pad(lengths.astype(jnp.int32), (0, Bp - B)).reshape(Bp, 1)
    unroll_w = W if W <= 16 else 4

    g0f, g0b = gate_proj([x_tm.reshape(W * Bp, -1)],
                         [params["l0_wih"]], params["l0_b"])
    h0f, h0b = bilstm(g0f.reshape(W, Bp, 4 * H), g0b.reshape(W, Bp, 4 * H),
                      lens_b, params["l0_whh"], tn=tn_w, unroll=unroll_w)
    # inter-layer dropout(0.4): eval-mode identity
    w1 = params["l1_wih"]
    g1f, g1b = gate_proj([h0f.reshape(W * Bp, H), h0b.reshape(W * Bp, H)],
                         [w1[:H], w1[H:]], params["l1_b"])
    h1f, h1b = bilstm(g1f.reshape(W, Bp, 4 * H), g1b.reshape(W, Bp, 4 * H),
                      lens_b, params["l1_whh"], tn=tn_w, unroll=unroll_w)

    # --- 'end' combination + dropout(0.25, eval id) + Linear (lane-padded) ---
    bidx = jnp.arange(B)
    src = jnp.concatenate([h1f[lengths - 1, bidx], h1b[lengths - 1, bidx]],
                          axis=-1)                                    # (B, 2H)
    logits = dense(src, params["lin_w"], params["lin_b"])[:, :out_dim]

    lstm_enc = jnp.concatenate([h1f[:, :B], h1b[:, :B]], axis=-1)     # (W, B, 2H)
    out = {"charlstm_encodings": charlstm_enc,
           "bert_merged_encodings": merged,
           "lstm_encodings": jnp.transpose(lstm_enc, (1, 0, 2)),
           "logits": logits}
    if targets is not None:
        logp = jax.nn.log_softmax(logits, axis=-1)
        out["loss"] = -jnp.mean(logp[jnp.arange(B), targets])
    return out


# ----------------------------------------------------------------------------
# Pure-JAX reference (mirrors the same bf16 cast points) for correctness check
# ----------------------------------------------------------------------------
def _ref_gate_proj(xs, ws, b):
    g = None
    for x, w in zip(xs, ws):
        d = jnp.dot(x.astype(BF16), w, preferred_element_type=jnp.float32)
        g = d if g is None else g + d
    g = g + b
    G = g.shape[-1] // 2
    return g[:, :G].astype(BF16), g[:, G:].astype(BF16)


def ref_bilstm(gxf, gxb, lens, whh):
    T, N, G4 = gxf.shape
    H = G4 // 4

    def run(gx, wh, reverse):
        idx = jnp.arange(T)
        if reverse:
            gx, idx = gx[::-1], idx[::-1]

        def step(carry, inp):
            h, c = carry
            g_x, t = inp
            g = g_x.astype(jnp.float32) + jnp.dot(
                h.astype(BF16), wh, preferred_element_type=jnp.float32)
            i = jax.nn.sigmoid(g[:, :H])
            f = jax.nn.sigmoid(g[:, H:2 * H])
            o = jax.nn.sigmoid(g[:, 2 * H:3 * H])
            gg = jnp.tanh(g[:, 3 * H:])
            c_n = f * c + i * gg
            h_n = o * jnp.tanh(c_n)
            valid = (t < lens)[:, None]
            return ((jnp.where(valid, h_n, h), jnp.where(valid, c_n, c)),
                    jnp.where(valid, h_n, 0.0))

        init = (jnp.zeros((N, H), jnp.float32), jnp.zeros((N, H), jnp.float32))
        _, outs = jax.lax.scan(step, init, (gx, idx))
        return outs[::-1] if reverse else outs

    return run(gxf, whh[0], False), run(gxb, whh[1], True)


def ref_forward(params, bert_encodings, split_mat, char_ids, char_lens,
                lengths, out_dim):
    B = bert_encodings.shape[0]
    W, Cmax = char_ids.shape[1], char_ids.shape[2]
    NW = B * W
    Hc, H = CHAR_HID, WORD_HID

    ids_tm = jnp.transpose(char_ids.reshape(NW, Cmax), (1, 0))
    embs_tm = params["emb"][ids_tm]
    gf, gb = _ref_gate_proj([embs_tm.reshape(Cmax * NW, -1)],
                            [params["c0_wih"]], params["c0_b"])
    lens_w = char_lens.reshape(NW).astype(jnp.int32)
    cof, cob = ref_bilstm(gf.reshape(Cmax, NW, 4 * Hc),
                          gb.reshape(Cmax, NW, 4 * Hc), lens_w, params["c0_whh"])
    last_c = jnp.maximum(lens_w, 1) - 1
    rows = jnp.arange(NW)
    char_end = jnp.concatenate([cof[last_c, rows], cob[last_c, rows]], axis=-1)
    word_mask = jnp.arange(W)[None, :] < lengths[:, None]
    charenc = (char_end.reshape(B, W, 2 * Hc)
               * word_mask[:, :, None].astype(jnp.float32))

    merged = jnp.einsum("bws,bsd->bwd", split_mat, bert_encodings)
    x = jnp.concatenate([charenc, merged], axis=-1).astype(BF16)
    x_tm = jnp.transpose(x, (1, 0, 2))
    lens_b = lengths.astype(jnp.int32)

    g0f, g0b = _ref_gate_proj([x_tm.reshape(W * B, -1)],
                              [params["l0_wih"]], params["l0_b"])
    h0f, h0b = ref_bilstm(g0f.reshape(W, B, 4 * H), g0b.reshape(W, B, 4 * H),
                          lens_b, params["l0_whh"])
    w1 = params["l1_wih"]
    g1f, g1b = _ref_gate_proj([h0f.reshape(W * B, H), h0b.reshape(W * B, H)],
                              [w1[:H], w1[H:]], params["l1_b"])
    h1f, h1b = ref_bilstm(g1f.reshape(W, B, 4 * H), g1b.reshape(W, B, 4 * H),
                          lens_b, params["l1_whh"])
    bidx = jnp.arange(B)
    src = jnp.concatenate([h1f[lengths - 1, bidx], h1b[lengths - 1, bidx]],
                          axis=-1)
    logits = (jnp.dot(src.astype(BF16), params["lin_w"],
                      preferred_element_type=jnp.float32)
              + params["lin_b"])[:, :out_dim]
    return logits


# ----------------------------------------------------------------------------
def build_split_matrix(batch_splits, max_words, seq_len):
    B = len(batch_splits)
    A = np.zeros((B, max_words, seq_len), dtype=np.float32)
    for bi, splits in enumerate(batch_splits):
        off = 1  # skip [CLS]
        for w, s in enumerate(splits):
            A[bi, w, off:off + s] = 1.0 / float(s)
            off += s
    return jnp.asarray(A)


if __name__ == "__main__":
    # small, module-consistent shapes
    B = 2            # batch (sentences)
    S = 12           # BERT token sequence length (incl. CLS/SEP budget)
    D_BERT = 128     # bert_config.hidden_size (stand-in)
    NCHARS = 40      # char vocab
    CHAR_EMB = 32    # char embedding dim
    CMAX = 8         # max chars per word
    OUT = 4          # out_dim

    batch_splits = [[2, 1, 3], [1, 2, 2, 1, 1]]        # words per sentence: 3, 5
    lengths_np = np.array([len(s) for s in batch_splits], dtype=np.int32)
    W = int(lengths_np.max())

    key = jax.random.PRNGKey(0)
    k_bert, k_chars, k_params = jax.random.split(key, 3)

    bert_encodings = jax.random.normal(k_bert, (B, S, D_BERT), jnp.float32)

    # per-word character lengths (0 for padded word slots)
    char_lens_np = np.zeros((B, W), dtype=np.int32)
    manual_lens = [[3, 5, 2], [4, 1, 6, 3, 2]]
    for b, ls in enumerate(manual_lens):
        char_lens_np[b, :len(ls)] = ls
    char_valid = np.arange(CMAX)[None, None, :] < char_lens_np[:, :, None]
    char_ids = jax.random.randint(k_chars, (B, W, CMAX), 1, NCHARS,
                                  dtype=jnp.int32)
    char_ids = jnp.where(jnp.asarray(char_valid), char_ids, 0)   # 0 = padding_idx

    split_mat = build_split_matrix(batch_splits, W, S)           # (B, W, S)
    lengths = jnp.asarray(lengths_np)                            # (B,)
    char_lens = jnp.asarray(char_lens_np)                        # (B, W)
    targets = jnp.asarray([1, 3], dtype=jnp.int32)

    params = init_params(k_params, NCHARS, CHAR_EMB, D_BERT, OUT)

    out = forward(params, bert_encodings, split_mat, char_ids, char_lens,
                  lengths, OUT, targets=targets)
    logits = jax.block_until_ready(out["logits"])
    _ = jax.block_until_ready(out["lstm_encodings"])
    _ = jax.block_until_ready(out["charlstm_encodings"])
    _ = jax.block_until_ready(out["bert_merged_encodings"])
    _ = jax.block_until_ready(out["loss"])

    ref_logits = jax.block_until_ready(
        ref_forward(params, bert_encodings, split_mat, char_ids, char_lens,
                    lengths, OUT))
    np.testing.assert_allclose(np.asarray(logits), np.asarray(ref_logits),
                               rtol=5e-3, atol=5e-3)

    print("KERNEL_OK")
</pallas_src>

<mosaic_0001>
module attributes {stable_mosaic.version = 11 : i64} {
  func.func @_gates1_kernel(%arg0: i32, %arg1: memref<128x32xf32, #tpu.memory_space<vmem>>, %arg2: memref<32x1024xbf16, #tpu.memory_space<vmem>>, %arg3: memref<1x1024xf32, #tpu.memory_space<vmem>>, %arg4: memref<128x512xbf16, #tpu.memory_space<vmem>>, %arg5: memref<128x512xbf16, #tpu.memory_space<vmem>>) attributes {dimension_semantics = [#tpu.dimension_semantics<parallel>], iteration_bounds = array<i64: 1>, scalar_prefetch = 0 : i64, scratch_operands = 0 : i64, tpu.core_type = #tpu.core_type<tc>, window_params = [{transform_indices = @transform_0, window_bounds = array<i64: 128, 32>}, {pipeline_mode = #tpu.pipeline_mode<synchronous>, transform_indices = @transform_1, window_bounds = array<i64: 32, 1024>}, {pipeline_mode = #tpu.pipeline_mode<synchronous>, transform_indices = @transform_2, window_bounds = array<i64: 1, 1024>}, {transform_indices = @transform_3, window_bounds = array<i64: 128, 512>}, {transform_indices = @transform_4, window_bounds = array<i64: 128, 512>}]} {
    %c0 = arith.constant 0 : index
    %c0_0 = arith.constant 0 : index
    %0 = vector.load %arg1[%c0, %c0_0] : memref<128x32xf32, #tpu.memory_space<vmem>>, vector<128x32xf32>
    %1 = arith.truncf %0 : vector<128x32xf32> to vector<128x32xbf16>
    %c0_1 = arith.constant 0 : index
    %c0_2 = arith.constant 0 : index
    %2 = vector.load %arg2[%c0_1, %c0_2] : memref<32x1024xbf16, #tpu.memory_space<vmem>>, vector<32x1024xbf16>
    %cst = arith.constant dense<0.000000e+00> : vector<128x1024xf32>
    %3 = tpu.matmul %1, %2, %cst {dimension_numbers = #tpu.dot_dimension_numbers<[1], [0], [0], [1], [0, 0, 1, 1], [], []>} : vector<128x32xbf16>, vector<32x1024xbf16>, vector<128x1024xf32> -> vector<128x1024xf32>
    %c0_3 = arith.constant 0 : index
    %c0_4 = arith.constant 0 : index
    %4 = vector.load %arg3[%c0_3, %c0_4] : memref<1x1024xf32, #tpu.memory_space<vmem>>, vector<1x1024xf32>
    %5 = vector.broadcast %4 : vector<1x1024xf32> to vector<128x1024xf32>
    %6 = arith.addf %3, %5 : vector<128x1024xf32>
    %7 = vector.extract_strided_slice %6 {offsets = [0, 0], sizes = [128, 512], strides = [1, 1]} : vector<128x1024xf32> to vector<128x512xf32>
    %8 = arith.truncf %7 : vector<128x512xf32> to vector<128x512xbf16>
    %c0_5 = arith.constant 0 : index
    %c0_6 = arith.constant 0 : index
    %9 = vector.load %arg4[%c0_5, %c0_6] : memref<128x512xbf16, #tpu.memory_space<vmem>>, vector<128x512xbf16>
    tpu.vector_store %arg4[%c0_5, %c0_6], %8 {strides = array<i32>} : memref<128x512xbf16, #tpu.memory_space<vmem>>, vector<128x512xbf16>,
    %10 = vector.extract_strided_slice %6 {offsets = [0, 512], sizes = [128, 512], strides = [1, 1]} : vector<128x1024xf32> to vector<128x512xf32>
    %11 = arith.truncf %10 : vector<128x512xf32> to vector<128x512xbf16>
    %c0_7 = arith.constant 0 : index
    %c0_8 = arith.constant 0 : index
    %12 = vector.load %arg5[%c0_7, %c0_8] : memref<128x512xbf16, #tpu.memory_space<vmem>>, vector<128x512xbf16>
    tpu.vector_store %arg5[%c0_7, %c0_8], %11 {strides = array<i32>} : memref<128x512xbf16, #tpu.memory_space<vmem>>, vector<128x512xbf16>,
    return
  }
  func.func @transform_0(%arg0: i32) -> (i32, i32) {
    %c0_i32 = arith.constant 0 : i32
    %c0_i32_0 = arith.constant 0 : i32
    return %arg0, %c0_i32 : i32, i32
  }
  func.func @transform_1(%arg0: i32) -> (i32, i32) {
    %c0_i32 = arith.constant 0 : i32
    %c0_i32_0 = arith.constant 0 : i32
    %c0_i32_1 = arith.constant 0 : i32
    return %c0_i32, %c0_i32_0 : i32, i32
  }
  func.func @transform_2(%arg0: i32) -> (i32, i32) {
    %c0_i32 = arith.constant 0 : i32
    %c0_i32_0 = arith.constant 0 : i32
    %c0_i32_1 = arith.constant 0 : i32
    return %c0_i32, %c0_i32_0 : i32, i32
  }
  func.func @transform_3(%arg0: i32) -> (i32, i32) {
    %c0_i32 = arith.constant 0 : i32
    %c0_i32_0 = arith.constant 0 : i32
    return %arg0, %c0_i32 : i32, i32
  }
  func.func @transform_4(%arg0: i32) -> (i32, i32) {
    %c0_i32 = arith.constant 0 : i32
    %c0_i32_0 = arith.constant 0 : i32
    return %arg0, %c0_i32 : i32, i32
  }
}

</mosaic_0001>

<llo_original>
// kernel: tpu_custom_call.1
$region0: #{tpu_custom_call.1}
  #allocation0 [shape = 'u32[]', space=smem, size = 0x4, offset = 0x4, fixed_abs, tag = 'smem constant byte address 0x4 - core index']
  #allocation1 [shape = 'u32[144,128]{1,0:T(1,128)}', space=vmem, size = 0x12000, scoped, tag = 'internal scratch']
  %s0 = inlined_call_operand.vmem [shape: f32[128,32], index: 0, kind: input, shape index: {}]
  %s1 = inlined_call_operand.vmem [shape: bf16[32,1024], index: 1, kind: input, shape index: {}]
  %s2 = inlined_call_operand.vmem [shape: f32[1,1024], index: 2, kind: input, shape index: {}]
  %s3 = inlined_call_operand.hbm [shape: bf16[128,512], index: 3, kind: output, shape index: {0}]
  %s4 = inlined_call_operand.hbm [shape: bf16[128,512], index: 4, kind: output, shape index: {1}]
  %5 = xla_tuple %s3, %s4
  %s6 = sld [smem:[#allocation0]]
  $region30: #{tpu_custom_call.1} parent=0
    _
  %s8 = ssub.s32 1, %s6
  %s9 = scalar_select 0, %s8, %s6
  $region1: #{tpu_custom_call.1} parent=0
    #allocation2 [shape = 'u8[131072]{0}', space=vmem, size = 0x20000, scoped, tag = 'output window, operand 0, single buffered']
    #allocation3 [shape = 's32[1]{0}', space=sflag, size = 0x4, scoped, tag = 'scoped memory for tpu_custom_call.1']
    #allocation4 [shape = 'u8[131072]{0}', space=vmem, size = 0x20000, scoped, tag = 'output window, operand 1, single buffered']
    #allocation5 [shape = 's32[1]{0}', space=sflag, size = 0x4, scoped, tag = 'scoped memory for tpu_custom_call.1']
    %10 = vsyncpa [#allocation3], 0
    %11 = vsyncpa [#allocation5], 0
    // Predicated region
    $region2: #{tpu_custom_call.1} parent=1 // pred_check
      _
    $region3: #{tpu_custom_call.1} parent=1 // pred_check_branch
      %13 = sbr.rel (0) target = $region5
    $region4: #{tpu_custom_call.1} parent=1 // pred_region
      _
    $region5: #{tpu_custom_call.1} parent=1 // pred_fallthru
      _
    // Predicated region
    $region6: #{tpu_custom_call.1} parent=1 // pred_check
      _
    $region7: #{tpu_custom_call.1} parent=1 // pred_check_branch
      %15 = sbr.rel (0) target = $region9
    $region8: #{tpu_custom_call.1} parent=1 // pred_region
      _
    $region9: #{tpu_custom_call.1} parent=1 // pred_fallthru
      _
    // Predicated region
    $region10: #{tpu_custom_call.1} parent=1 // pred_check
      _
    $region11: #{tpu_custom_call.1} parent=1 // pred_check_branch
      %17 = sbr.rel (0) target = $region13
    $region12: #{tpu_custom_call.1} parent=1 // pred_region
      _
    $region13: #{tpu_custom_call.1} parent=1 // pred_fallthru
      _
    %v19 = vld [vmem:[%s0] sm:$0xff]
    %v20 = vld [vmem:[%s0 + $0x8] sm:$0xff]
    %v21 = vld [vmem:[%s0 + $0x10] sm:$0xff]
    %v22 = vld [vmem:[%s0 + $0x18] sm:$0xff]
    %v23 = vld [vmem:[%s0 + $0x20] sm:$0xff]
    %v24 = vld [vmem:[%s0 + $0x28] sm:$0xff]
    %v25 = vld [vmem:[%s0 + $0x30] sm:$0xff]
    %v26 = vld [vmem:[%s0 + $0x38] sm:$0xff]
    %v27 = vld [vmem:[%s0 + $0x40] sm:$0xff]
    %v28 = vld [vmem:[%s0 + $0x48] sm:$0xff]
    %v29 = vld [vmem:[%s0 + $0x50] sm:$0xff]
    %v30 = vld [vmem:[%s0 + $0x58] sm:$0xff]
    %v31 = vld [vmem:[%s0 + $0x60] sm:$0xff]
    %v32 = vld [vmem:[%s0 + $0x68] sm:$0xff]
    %v33 = vld [vmem:[%s0 + $0x70] sm:$0xff]
    %v34 = vld [vmem:[%s0 + $0x78] sm:$0xff]
    %v35 = vpack.c.bf16 %v20, %v19
    %v36 = vpack.c.bf16 %v22, %v21
    %v37 = vpack.c.bf16 %v24, %v23
    %v38 = vpack.c.bf16 %v26, %v25
    %v39 = vpack.c.bf16 %v28, %v27
    %v40 = vpack.c.bf16 %v30, %v29
    %v41 = vpack.c.bf16 %v32, %v31
    %v42 = vpack.c.bf16 %v34, %v33
    %v43 = vld [vmem:[%s1] sm:$0xff]
    %v44 = vld [vmem:[%s1 + $0x8] sm:$0xff]
    %v45 = vld [vmem:[%s1 + $0x10] sm:$0xff]
    %v46 = vld [vmem:[%s1 + $0x18] sm:$0xff]
    %v47 = vld [vmem:[%s1 + $0x20] sm:$0xff]
    %v48 = vld [vmem:[%s1 + $0x28] sm:$0xff]
    %v49 = vld [vmem:[%s1 + $0x30] sm:$0xff]
    %v50 = vld [vmem:[%s1 + $0x38] sm:$0xff]
    %v51 = vld [vmem:[%s1 + $0x40] sm:$0xff]
    %v52 = vld [vmem:[%s1 + $0x48] sm:$0xff]
    %v53 = vld [vmem:[%s1 + $0x50] sm:$0xff]
    %v54 = vld [vmem:[%s1 + $0x58] sm:$0xff]
    %v55 = vld [vmem:[%s1 + $0x60] sm:$0xff]
    %v56 = vld [vmem:[%s1 + $0x68] sm:$0xff]
    %v57 = vld [vmem:[%s1 + $0x70] sm:$0xff]
    %v58 = vld [vmem:[%s1 + $0x78] sm:$0xff]
    %v59 = vld [vmem:[%s2] sm:$0xff]
    %v61 = vlaneseq
    %v62 = vshrl.u32 %v61, 7
    %v63 = vsub.s32 0, %v62
    %v64 = vrot.slane %v59, %v63
    %v65 = vlaneseq
    %v66 = vshrl.u32 %v65, 7
    %v67 = vsub.s32 1, %v66
    %v68 = vrot.slane %v59, %v67
    %v69 = vlaneseq
    %v70 = vshrl.u32 %v69, 7
    %v71 = vsub.s32 2, %v70
    %v72 = vrot.slane %v59, %v71
    %v73 = vlaneseq
    %v74 = vshrl.u32 %v73, 7
    %v75 = vsub.s32 3, %v74
    %v76 = vrot.slane %v59, %v75
    %v77 = vlaneseq
    %v78 = vshrl.u32 %v77, 7
    %v79 = vsub.s32 4, %v78
    %v80 = vrot.slane %v59, %v79
    %v81 = vlaneseq
    %v82 = vshrl.u32 %v81, 7
    %v83 = vsub.s32 5, %v82
    %v84 = vrot.slane %v59, %v83
    %v85 = vlaneseq
    %v86 = vshrl.u32 %v85, 7
    %v87 = vsub.s32 6, %v86
    %v88 = vrot.slane %v59, %v87
    %v89 = vlaneseq
    %v90 = vshrl.u32 %v89, 7
    %v91 = vsub.s32 7, %v90
    %v92 = vrot.slane %v59, %v91
    %v117 = vunpack.c.l.b16 %v43
    %v118 = vunpack.c.h.b16 %v43
    %v119 = vunpack.c.l.b16 %v44
    %v120 = vunpack.c.h.b16 %v44
    %v121 = vunpack.c.l.b16 %v45
    %v122 = vunpack.c.h.b16 %v45
    %v123 = vunpack.c.l.b16 %v46
    %v124 = vunpack.c.h.b16 %v46
    %v125 = vunpack.c.l.b16 %v47
    %v126 = vunpack.c.h.b16 %v47
    %v127 = vunpack.c.l.b16 %v48
    %v128 = vunpack.c.h.b16 %v48
    %v129 = vunpack.c.l.b16 %v49
    %v130 = vunpack.c.h.b16 %v49
    %v131 = vunpack.c.l.b16 %v50
    %v132 = vunpack.c.h.b16 %v50
    %v133 = vunpack.c.l.b16 %v51
    %v134 = vunpack.c.h.b16 %v51
    %v135 = vunpack.c.l.b16 %v52
    %v136 = vunpack.c.h.b16 %v52
    %v137 = vunpack.c.l.b16 %v53
    %v138 = vunpack.c.h.b16 %v53
    %v139 = vunpack.c.l.b16 %v54
    %v140 = vunpack.c.h.b16 %v54
    %v141 = vunpack.c.l.b16 %v55
    %v142 = vunpack.c.h.b16 %v55
    %v143 = vunpack.c.l.b16 %v56
    %v144 = vunpack.c.h.b16 %v56
    %v145 = vunpack.c.l.b16 %v57
    %v146 = vunpack.c.h.b16 %v57
    %v147 = vunpack.c.l.b16 %v58
    %v148 = vunpack.c.h.b16 %v58
    %v149 = vpack.c.b16 %v125, %v117
    %v150 = vpack.c.b16 %v126, %v118
    %v151 = vpack.c.b16 %v127, %v119
    %v152 = vpack.c.b16 %v128, %v120
    %v153 = vpack.c.b16 %v129, %v121
    %v154 = vpack.c.b16 %v130, %v122
    %v155 = vpack.c.b16 %v131, %v123
    %v156 = vpack.c.b16 %v132, %v124
    %v157 = vpack.c.b16 %v141, %v133
    %v158 = vpack.c.b16 %v142, %v134
    %v159 = vpack.c.b16 %v143, %v135
    %v160 = vpack.c.b16 %v144, %v136
    %v161 = vpack.c.b16 %v145, %v137
    %v162 = vpack.c.b16 %v146, %v138
    %v163 = vpack.c.b16 %v147, %v139
    %v164 = vpack.c.b16 %v148, %v140
    %vm181 = vcmask 261120
    %v183 = vsel %vm181, %v35, 0
    %v186 = vsel %vm181, %v36, 0
    %v189 = vsel %vm181, %v37, 0
    %v192 = vsel %vm181, %v38, 0
    %v195 = vsel %vm181, %v39, 0
    %v198 = vsel %vm181, %v40, 0
    %v201 = vsel %vm181, %v41, 0
    %v204 = vsel %vm181, %v42, 0
    %206 = vmatprep.subr.bf16.mxu0 %v150
    %207 = vmatpush1.bf16.msra.mxu0 %v149
    %208 = vmatprep.subr.bf16.mxu0 %v158
    %209 = vmatpush1.bf16.msra.mxu0 %v157
    %210 = vmatprep.subr.bf16.mxu0 0
    %211 = vmatpush1.bf16.msra.mxu0 0
    %212 = vmatprep.subr.bf16.mxu0 0
    %213 = vmatpush1.bf16.msra.mxu0 0
    %214 = vmatprep.subr.bf16.mxu0 0
    %215 = vmatpush1.bf16.msra.mxu0 0
    %216 = vmatprep.subr.bf16.mxu0 0
    %217 = vmatpush1.bf16.msra.mxu0 0
    %218 = vmatprep.subr.bf16.mxu0 0
    %219 = vmatpush1.bf16.msra.mxu0 0
    %220 = vmatprep.subr.bf16.mxu0 0
    %221 = vmatpush1.bf16.msra.mxu0 0
    %222 = vmatprep.subr.bf16.mxu0 0
    %223 = vmatpush1.bf16.msra.mxu0 0
    %224 = vmatprep.subr.bf16.mxu0 0
    %225 = vmatpush1.bf16.msra.mxu0 0
    %226 = vmatprep.subr.bf16.mxu0 0
    %227 = vmatpush1.bf16.msra.mxu0 0
    %228 = vmatprep.subr.bf16.mxu0 0
    %229 = vmatpush1.bf16.msra.mxu0 0
    %230 = vmatprep.subr.bf16.mxu0 0
    %231 = vmatpush1.bf16.msra.mxu0 0
    %232 = vmatprep.subr.bf16.mxu0 0
    %233 = vmatpush1.bf16.msra.mxu0 0
    %234 = vmatprep.subr.bf16.mxu0 0
    %235 = vmatpush1.bf16.msra.mxu0 0
    %236 = vmatprep.subr.bf16.mxu0 0
    %237 = vmatpush1.bf16.msra.mxu0 0
    %238 = vmatprep.mubr.bf16.mxu0 0
    %239 = vmatmul.mubr.bf16.gmra.mrb[0].mxu0 %v183
    %v240 = vpop.f32.mrb[0].mxu0
    %v241 = vadd.f32 %v64, %v240
    %v242 = vpop.f32.mrb[0].mxu0
    %v243 = vadd.f32 %v68, %v242
    %v244 = vpop.f32.mrb[0].mxu0
    %v245 = vadd.f32 %v64, %v244
    %v246 = vpop.f32.mrb[0].mxu0
    %v247 = vadd.f32 %v68, %v246
    %248 = vmatprep.mubr.bf16.mxu0 0
    %249 = vmatmul.mubr.bf16.gmra.mrb[0].mxu0 %v186
    %v250 = vpop.f32.mrb[0].mxu0
    %v251 = vadd.f32 %v64, %v250
    %v252 = vpop.f32.mrb[0].mxu0
    %v253 = vadd.f32 %v68, %v252
    %v254 = vpop.f32.mrb[0].mxu0
    %v255 = vadd.f32 %v64, %v254
    %v256 = vpop.f32.mrb[0].mxu0
    %v257 = vadd.f32 %v68, %v256
    %258 = vmatprep.mubr.bf16.mxu0 0
    %259 = vmatmul.mubr.bf16.gmra.mrb[0].mxu0 %v189
    %v260 = vpop.f32.mrb[0].mxu0
    %v261 = vadd.f32 %v64, %v260
    %v262 = vpop.f32.mrb[0].mxu0
    %v263 = vadd.f32 %v68, %v262
    %v264 = vpop.f32.mrb[0].mxu0
    %v265 = vadd.f32 %v64, %v264
    %v266 = vpop.f32.mrb[0].mxu0
    %v267 = vadd.f32 %v68, %v266
    %268 = vmatprep.mubr.bf16.mxu0 0
    %269 = vmatmul.mubr.bf16.gmra.mrb[0].mxu0 %v192
    %v270 = vpop.f32.mrb[0].mxu0
    %v271 = vadd.f32 %v64, %v270
    %v272 = vpop.f32.mrb[0].mxu0
    %v273 = vadd.f32 %v68, %v272
    %v274 = vpop.f32.mrb[0].mxu0
    %v275 = vadd.f32 %v64, %v274
    %v276 = vpop.f32.mrb[0].mxu0
    %v277 = vadd.f32 %v68, %v276
    %278 = vmatprep.mubr.bf16.mxu0 0
    %279 = vmatmul.mubr.bf16.gmra.mrb[0].mxu0 %v195
    %v280 = vpop.f32.mrb[0].mxu0
    %v281 = vadd.f32 %v64, %v280
    %v282 = vpop.f32.mrb[0].mxu0
    %v283 = vadd.f32 %v68, %v282
    %v284 = vpop.f32.mrb[0].mxu0
    %v285 = vadd.f32 %v64, %v284
    %v286 = vpop.f32.mrb[0].mxu0
    %v287 = vadd.f32 %v68, %v286
    %288 = vmatprep.mubr.bf16.mxu0 0
    %289 = vmatmul.mubr.bf16.gmra.mrb[0].mxu0 %v198
    %v290 = vpop.f32.mrb[0].mxu0
    %v291 = vadd.f32 %v64, %v290
    %v292 = vpop.f32.mrb[0].mxu0
    %v293 = vadd.f32 %v68, %v292
    %v294 = vpop.f32.mrb[0].mxu0
    %v295 = vadd.f32 %v64, %v294
    %v296 = vpop.f32.mrb[0].mxu0
    %v297 = vadd.f32 %v68, %v296
    %298 = vmatprep.mubr.bf16.mxu0 0
    %299 = vmatmul.mubr.bf16.gmra.mrb[0].mxu0 %v201
    %v300 = vpop.f32.mrb[0].mxu0
    %v301 = vadd.f32 %v64, %v300
    %v302 = vpop.f32.mrb[0].mxu0
    %v303 = vadd.f32 %v68, %v302
    %v304 = vpop.f32.mrb[0].mxu0
    %v305 = vadd.f32 %v64, %v304
    %v306 = vpop.f32.mrb[0].mxu0
    %v307 = vadd.f32 %v68, %v306
    %308 = vmatprep.mubr.bf16.mxu0 0
    %309 = vmatmul.mubr.bf16.gmra.mrb[0].mxu0 %v204
    %v310 = vpop.f32.mrb[0].mxu0
    %v311 = vadd.f32 %v64, %v310
    %v312 = vpop.f32.mrb[0].mxu0
    %v313 = vadd.f32 %v68, %v312
    %v314 = vpop.f32.mrb[0].mxu0
    %v315 = vadd.f32 %v64, %v314
    %v316 = vpop.f32.mrb[0].mxu0
    %v317 = vadd.f32 %v68, %v316
    %318 = vdwg.mxu0
    %319 = vmatprep.subr.bf16.mxu0 %v152
    %320 = vmatpush1.bf16.msra.mxu0 %v151
    %321 = vmatprep.subr.bf16.mxu0 %v160
    %322 = vmatpush1.bf16.msra.mxu0 %v159
    %323 = vmatprep.subr.bf16.mxu0 0
    %324 = vmatpush1.bf16.msra.mxu0 0
    %325 = vmatprep.subr.bf16.mxu0 0
    %326 = vmatpush1.bf16.msra.mxu0 0
    %327 = vmatprep.subr.bf16.mxu0 0
    %328 = vmatpush1.bf16.msra.mxu0 0
    %329 = vmatprep.subr.bf16.mxu0 0
    %330 = vmatpush1.bf16.msra.mxu0 0
    %331 = vmatprep.subr.bf16.mxu0 0
    %332 = vmatpush1.bf16.msra.mxu0 0
    %333 = vmatprep.subr.bf16.mxu0 0
    %334 = vmatpush1.bf16.msra.mxu0 0
    %335 = vmatprep.subr.bf16.mxu0 0
    %336 = vmatpush1.bf16.msra.mxu0 0
    %337 = vmatprep.subr.bf16.mxu0 0
    %338 = vmatpush1.bf16.msra.mxu0 0
    %339 = vmatprep.subr.bf16.mxu0 0
    %340 = vmatpush1.bf16.msra.mxu0 0
    %341 = vmatprep.subr.bf16.mxu0 0
    %342 = vmatpush1.bf16.msra.mxu0 0
    %343 = vmatprep.subr.bf16.mxu0 0
    %344 = vmatpush1.bf16.msra.mxu0 0
    %345 = vmatprep.subr.bf16.mxu0 0
    %346 = vmatpush1.bf16.msra.mxu0 0
    %347 = vmatprep.subr.bf16.mxu0 0
    %348 = vmatpush1.bf16.msra.mxu0 0
    %349 = vmatprep.subr.bf16.mxu0 0
    %350 = vmatpush1.bf16.msra.mxu0 0
    %351 = vmatprep.mubr.bf16.mxu0 0
    %352 = vmatmul.mubr.bf16.gmra.mrb[0].mxu0 %v183
    %v353 = vpop.f32.mrb[0].mxu0
    %v354 = vadd.f32 %v72, %v353
    %v355 = vpop.f32.mrb[0].mxu0
    %v356 = vadd.f32 %v76, %v355
    %v357 = vpop.f32.mrb[0].mxu0
    %v358 = vadd.f32 %v72, %v357
    %v359 = vpop.f32.mrb[0].mxu0
    %v360 = vadd.f32 %v76, %v359
    %361 = vmatprep.mubr.bf16.mxu0 0
    %362 = vmatmul.mubr.bf16.gmra.mrb[0].mxu0 %v186
    %v363 = vpop.f32.mrb[0].mxu0
    %v364 = vadd.f32 %v72, %v363
    %v365 = vpop.f32.mrb[0].mxu0
    %v366 = vadd.f32 %v76, %v365
    %v367 = vpop.f32.mrb[0].mxu0
    %v368 = vadd.f32 %v72, %v367
    %v369 = vpop.f32.mrb[0].mxu0
    %v370 = vadd.f32 %v76, %v369
    %371 = vmatprep.mubr.bf16.mxu0 0
    %372 = vmatmul.mubr.bf16.gmra.mrb[0].mxu0 %v189
    %v373 = vpop.f32.mrb[0].mxu0
    %v374 = vadd.f32 %v72, %v373
    %v375 = vpop.f32.mrb[0].mxu0
    %v376 = vadd.f32 %v76, %v375
    %v377 = vpop.f32.mrb[0].mxu0
    %v378 = vadd.f32 %v72, %v377
    %v379 = vpop.f32.mrb[0].mxu0
    %v380 = vadd.f32 %v76, %v379
    %381 = vmatprep.mubr.bf16.mxu0 0
    %382 = vmatmul.mubr.bf16.gmra.mrb[0].mxu0 %v192
    %v383 = vpop.f32.mrb[0].mxu0
    %v384 = vadd.f32 %v72, %v383
    %v385 = vpop.f32.mrb[0].mxu0
    %v386 = vadd.f32 %v76, %v385
    %v387 = vpop.f32.mrb[0].mxu0
    %v388 = vadd.f32 %v72, %v387
    %v389 = vpop.f32.mrb[0].mxu0
    %v390 = vadd.f32 %v76, %v389
    %391 = vmatprep.mubr.bf16.mxu0 0
    %392 = vmatmul.mubr.bf16.gmra.mrb[0].mxu0 %v195
    %v393 = vpop.f32.mrb[0].mxu0
    %v394 = vadd.f32 %v72, %v393
    %v395 = vpop.f32.mrb[0].mxu0
    %v396 = vadd.f32 %v76, %v395
    %v397 = vpop.f32.mrb[0].mxu0
    %v398 = vadd.f32 %v72, %v397
    %v399 = vpop.f32.mrb[0].mxu0
    %v400 = vadd.f32 %v76, %v399
    %401 = vmatprep.mubr.bf16.mxu0 0
    %402 = vmatmul.mubr.bf16.gmra.mrb[0].mxu0 %v198
    %v403 = vpop.f32.mrb[0].mxu0
    %v404 = vadd.f32 %v72, %v403
    %v405 = vpop.f32.mrb[0].mxu0
    %v406 = vadd.f32 %v76, %v405
    %v407 = vpop.f32.mrb[0].mxu0
    %v408 = vadd.f32 %v72, %v407
    %v409 = vpop.f32.mrb[0].mxu0
    %v410 = vadd.f32 %v76, %v409
    %411 = vmatprep.mubr.bf16.mxu0 0
    %412 = vmatmul.mubr.bf16.gmra.mrb[0].mxu0 %v201
    %v413 = vpop.f32.mrb[0].mxu0
    %v414 = vadd.f32 %v72, %v413
    %v415 = vpop.f32.mrb[0].mxu0
    %v416 = vadd.f32 %v76, %v415
    %v417 = vpop.f32.mrb[0].mxu0
    %v418 = vadd.f32 %v72, %v417
    %v419 = vpop.f32.mrb[0].mxu0
    %v420 = vadd.f32 %v76, %v419
    %421 = vmatprep.mubr.bf16.mxu0 0
    %422 = vmatmul.mubr.bf16.gmra.mrb[0].mxu0 %v204
    %v423 = vpop.f32.mrb[0].mxu0
    %v424 = vadd.f32 %v72, %v423
    %v425 = vpop.f32.mrb[0].mxu0
    %v426 = vadd.f32 %v76, %v425
    %v427 = vpop.f32.mrb[0].mxu0
    %v428 = vadd.f32 %v72, %v427
    %v429 = vpop.f32.mrb[0].mxu0
    %v430 = vadd.f32 %v76, %v429
    %431 = vdwg.mxu0
    %432 = vmatprep.subr.bf16.mxu0 %v154
    %433 = vmatpush1.bf16.msra.mxu0 %v153
    %434 = vmatprep.subr.bf16.mxu0 %v162
    %435 = vmatpush1.bf16.msra.mxu0 %v161
    %436 = vmatprep.subr.bf16.mxu0 0
    %437 = vmatpush1.bf16.msra.mxu0 0
    %438 = vmatprep.subr.bf16.mxu0 0
    %439 = vmatpush1.bf16.msra.mxu0 0
    %440 = vmatprep.subr.bf16.mxu0 0
    %441 = vmatpush1.bf16.msra.mxu0 0
    %442 = vmatprep.subr.bf16.mxu0 0
    %443 = vmatpush1.bf16.msra.mxu0 0
    %444 = vmatprep.subr.bf16.mxu0 0
    %445 = vmatpush1.bf16.msra.mxu0 0
    %446 = vmatprep.subr.bf16.mxu0 0
    %447 = vmatpush1.bf16.msra.mxu0 0
    %448 = vmatprep.subr.bf16.mxu0 0
    %449 = vmatpush1.bf16.msra.mxu0 0
    %450 = vmatprep.subr.bf16.mxu0 0
    %451 = vmatpush1.bf16.msra.mxu0 0
    %452 = vmatprep.subr.bf16.mxu0 0
    %453 = vmatpush1.bf16.msra.mxu0 0
    %454 = vmatprep.subr.bf16.mxu0 0
    %455 = vmatpush1.bf16.msra.mxu0 0
    %456 = vmatprep.subr.bf16.mxu0 0
    %457 = vmatpush1.bf16.msra.mxu0 0
    %458 = vmatprep.subr.bf16.mxu0 0
    %459 = vmatpush1.bf16.msra.mxu0 0
    %460 = vmatprep.subr.bf16.mxu0 0
    %461 = vmatpush1.bf16.msra.mxu0 0
    %462 = vmatprep.subr.bf16.mxu0 0
    %463 = vmatpush1.bf16.msra.mxu0 0
    %464 = vmatprep.mubr.bf16.mxu0 0
    %465 = vmatmul.mubr.bf16.gmra.mrb[0].mxu0 %v183
    %v466 = vpop.f32.mrb[0].mxu0
    %v467 = vadd.f32 %v80, %v466
    %v468 = vpop.f32.mrb[0].mxu0
    %v469 = vadd.f32 %v84, %v468
    %v470 = vpop.f32.mrb[0].mxu0
    %v471 = vadd.f32 %v80, %v470
    %v472 = vpop.f32.mrb[0].mxu0
    %v473 = vadd.f32 %v84, %v472
    %474 = vmatprep.mubr.bf16.mxu0 0
    %475 = vmatmul.mubr.bf16.gmra.mrb[0].mxu0 %v186
    %v476 = vpop.f32.mrb[0].mxu0
    %v477 = vadd.f32 %v80, %v476
    %v478 = vpop.f32.mrb[0].mxu0
    %v479 = vadd.f32 %v84, %v478
    %v480 = vpop.f32.mrb[0].mxu0
    %v481 = vadd.f32 %v80, %v480
    %v482 = vpop.f32.mrb[0].mxu0
    %v483 = vadd.f32 %v84, %v482
    %484 = vmatprep.mubr.bf16.mxu0 0
    %485 = vmatmul.mubr.bf16.gmra.mrb[0].mxu0 %v189
    %v486 = vpop.f32.mrb[0].mxu0
    %v487 = vadd.f32 %v80, %v486
    %v488 = vpop.f32.mrb[0].mxu0
    %v489 = vadd.f32 %v84, %v488
    %v490 = vpop.f32.mrb[0].mxu0
    %v491 = vadd.f32 %v80, %v490
    %v492 = vpop.f32.mrb[0].mxu0
    %v493 = vadd.f32 %v84, %v492
    %494 = vmatprep.mubr.bf16.mxu0 0
    %495 = vmatmul.mubr.bf16.gmra.mrb[0].mxu0 %v192
    %v496 = vpop.f32.mrb[0].mxu0
    %v497 = vadd.f32 %v80, %v496
    %v498 = vpop.f32.mrb[0].mxu0
    %v499 = vadd.f32 %v84, %v498
    %v500 = vpop.f32.mrb[0].mxu0
    %v501 = vadd.f32 %v80, %v500
    %v502 = vpop.f32.mrb[0].mxu0
    %v503 = vadd.f32 %v84, %v502
    %504 = vmatprep.mubr.bf16.mxu0 0
    %505 = vmatmul.mubr.bf16.gmra.mrb[0].mxu0 %v195
    %v506 = vpop.f32.mrb[0].mxu0
    %v507 = vadd.f32 %v80, %v506
    %v508 = vpop.f32.mrb[0].mxu0
    %v509 = vadd.f32 %v84, %v508
    %v510 = vpop.f32.mrb[0].mxu0
    %v511 = vadd.f32 %v80, %v510
    %v512 = vpop.f32.mrb[0].mxu0
    %v513 = vadd.f32 %v84, %v512
    %514 = vmatprep.mubr.bf16.mxu0 0
    %515 = vmatmul.mubr.bf16.gmra.mrb[0].mxu0 %v198
    %v516 = vpop.f32.mrb[0].mxu0
    %v517 = vadd.f32 %v80, %v516
    %v518 = vpop.f32.mrb[0].mxu0
    %v519 = vadd.f32 %v84, %v518
    %v520 = vpop.f32.mrb[0].mxu0
    %v521 = vadd.f32 %v80, %v520
    %v522 = vpop.f32.mrb[0].mxu0
    %v523 = vadd.f32 %v84, %v522
    %524 = vmatprep.mubr.bf16.mxu0 0
    %525 = vmatmul.mubr.bf16.gmra.mrb[0].mxu0 %v201
    %v526 = vpop.f32.mrb[0].mxu0
    %v527 = vadd.f32 %v80, %v526
    %v528 = vpop.f32.mrb[0].mxu0
    %v529 = vadd.f32 %v84, %v528
    %v530 = vpop.f32.mrb[0].mxu0
    %v531 = vadd.f32 %v80, %v530
    %v532 = vpop.f32.mrb[0].mxu0
    %v533 = vadd.f32 %v84, %v532
    %534 = vmatprep.mubr.bf16.mxu0 0
    %535 = vmatmul.mubr.bf16.gmra.mrb[0].mxu0 %v204
    %v536 = vpop.f32.mrb[0].mxu0
    %v537 = vadd.f32 %v80, %v536
    %v538 = vpop.f32.mrb[0].mxu0
    %v539 = vadd.f32 %v84, %v538
    %v540 = vpop.f32.mrb[0].mxu0
    %v541 = vadd.f32 %v80, %v540
    %v542 = vpop.f32.mrb[0].mxu0
    %v543 = vadd.f32 %v84, %v542
    %544 = vdwg.mxu0
    %545 = vmatprep.subr.bf16.mxu0 %v156
    %546 = vmatpush1.bf16.msra.mxu0 %v155
    %547 = vmatprep.subr.bf16.mxu0 %v164
    %548 = vmatpush1.bf16.msra.mxu0 %v163
    %549 = vmatprep.subr.bf16.mxu0 0
    %550 = vmatpush1.bf16.msra.mxu0 0
    %551 = vmatprep.subr.bf16.mxu0 0
    %552 = vmatpush1.bf16.msra.mxu0 0
    %553 = vmatprep.subr.bf16.mxu0 0
    %554 = vmatpush1.bf16.msra.mxu0 0
    %555 = vmatprep.subr.bf16.mxu0 0
    %556 = vmatpush1.bf16.msra.mxu0 0
    %557 = vmatprep.subr.bf16.mxu0 0
    %558 = vmatpush1.bf16.msra.mxu0 0
    %559 = vmatprep.subr.bf16.mxu0 0
    %560 = vmatpush1.bf16.msra.mxu0 0
    %561 = vmatprep.subr.bf16.mxu0 0
    %562 = vmatpush1.bf16.msra.mxu0 0
    %563 = vmatprep.subr.bf16.mxu0 0
    %564 = vmatpush1.bf16.msra.mxu0 0
    %565 = vmatprep.subr.bf16.mxu0 0
    %566 = vmatpush1.bf16.msra.mxu0 0
    %567 = vmatprep.subr.bf16.mxu0 0
    %568 = vmatpush1.bf16.msra.mxu0 0
    %569 = vmatprep.subr.bf16.mxu0 0
    %570 = vmatpush1.bf16.msra.mxu0 0
    %571 = vmatprep.subr.bf16.mxu0 0
    %572 = vmatpush1.bf16.msra.mxu0 0
    %573 = vmatprep.subr.bf16.mxu0 0
    %574 = vmatpush1.bf16.msra.mxu0 0
    %575 = vmatprep.subr.bf16.mxu0 0
    %576 = vmatpush1.bf16.msra.mxu0 0
    %577 = vmatprep.mubr.bf16.mxu0 0
    %578 = vmatmul.mubr.bf16.gmra.mrb[0].mxu0 %v183
    %v579 = vpop.f32.mrb[0].mxu0
    %v580 = vadd.f32 %v88, %v579
    %v581 = vpop.f32.mrb[0].mxu0
    %v582 = vadd.f32 %v92, %v581
    %v583 = vpop.f32.mrb[0].mxu0
    %v584 = vadd.f32 %v88, %v583
    %v585 = vpop.f32.mrb[0].mxu0
    %v586 = vadd.f32 %v92, %v585
    %587 = vmatprep.mubr.bf16.mxu0 0
    %588 = vmatmul.mubr.bf16.gmra.mrb[0].mxu0 %v186
    %v589 = vpop.f32.mrb[0].mxu0
    %v590 = vadd.f32 %v88, %v589
    %v591 = vpop.f32.mrb[0].mxu0
    %v592 = vadd.f32 %v92, %v591
    %v593 = vpop.f32.mrb[0].mxu0
    %v594 = vadd.f32 %v88, %v593
    %v595 = vpop.f32.mrb[0].mxu0
    %v596 = vadd.f32 %v92, %v595
    %597 = vmatprep.mubr.bf16.mxu0 0
    %598 = vmatmul.mubr.bf16.gmra.mrb[0].mxu0 %v189
    %v599 = vpop.f32.mrb[0].mxu0
    %v600 = vadd.f32 %v88, %v599
    %v601 = vpop.f32.mrb[0].mxu0
    %v602 = vadd.f32 %v92, %v601
    %v603 = vpop.f32.mrb[0].mxu0
    %v604 = vadd.f32 %v88, %v603
    %v605 = vpop.f32.mrb[0].mxu0
    %v606 = vadd.f32 %v92, %v605
    %607 = vmatprep.mubr.bf16.mxu0 0
    %608 = vmatmul.mubr.bf16.gmra.mrb[0].mxu0 %v192
    %v609 = vpop.f32.mrb[0].mxu0
    %v610 = vadd.f32 %v88, %v609
    %v611 = vpop.f32.mrb[0].mxu0
    %v612 = vadd.f32 %v92, %v611
    %v613 = vpop.f32.mrb[0].mxu0
    %v614 = vadd.f32 %v88, %v613
    %v615 = vpop.f32.mrb[0].mxu0
    %v616 = vadd.f32 %v92, %v615
    %617 = vmatprep.mubr.bf16.mxu0 0
    %618 = vmatmul.mubr.bf16.gmra.mrb[0].mxu0 %v195
    %v619 = vpop.f32.mrb[0].mxu0
    %v620 = vadd.f32 %v88, %v619
    %v621 = vpop.f32.mrb[0].mxu0
    %v622 = vadd.f32 %v92, %v621
    %v623 = vpop.f32.mrb[0].mxu0
    %v624 = vadd.f32 %v88, %v623
    %v625 = vpop.f32.mrb[0].mxu0
    %v626 = vadd.f32 %v92, %v625
    %627 = vmatprep.mubr.bf16.mxu0 0
    %628 = vmatmul.mubr.bf16.gmra.mrb[0].mxu0 %v198
    %v629 = vpop.f32.mrb[0].mxu0
    %v630 = vadd.f32 %v88, %v629
    %v631 = vpop.f32.mrb[0].mxu0
    %v632 = vadd.f32 %v92, %v631
    %v633 = vpop.f32.mrb[0].mxu0
    %v634 = vadd.f32 %v88, %v633
    %v635 = vpop.f32.mrb[0].mxu0
    %v636 = vadd.f32 %v92, %v635
    %637 = vmatprep.mubr.bf16.mxu0 0
    %638 = vmatmul.mubr.bf16.gmra.mrb[0].mxu0 %v201
    %v639 = vpop.f32.mrb[0].mxu0
    %v640 = vadd.f32 %v88, %v639
    %v641 = vpop.f32.mrb[0].mxu0
    %v642 = vadd.f32 %v92, %v641
    %v643 = vpop.f32.mrb[0].mxu0
    %v644 = vadd.f32 %v88, %v643
    %v645 = vpop.f32.mrb[0].mxu0
    %v646 = vadd.f32 %v92, %v645
    %647 = vmatprep.mubr.bf16.mxu0 0
    %648 = vmatmul.mubr.bf16.gmra.mrb[0].mxu0 %v204
    %v649 = vpop.f32.mrb[0].mxu0
    %v650 = vadd.f32 %v88, %v649
    %v651 = vpop.f32.mrb[0].mxu0
    %v652 = vadd.f32 %v92, %v651
    %v653 = vpop.f32.mrb[0].mxu0
    %v654 = vadd.f32 %v88, %v653
    %v655 = vpop.f32.mrb[0].mxu0
    %v656 = vadd.f32 %v92, %v655
    %657 = vdwg.mxu0
    %v658 = vpack.c.bf16 %v245, %v241
    %v659 = vpack.c.bf16 %v247, %v243
    %v660 = vpack.c.bf16 %v358, %v354
    %v661 = vpack.c.bf16 %v360, %v356
    %v662 = vpack.c.bf16 %v255, %v251
    %v663 = vpack.c.bf16 %v257, %v253
    %v664 = vpack.c.bf16 %v368, %v364
    %v665 = vpack.c.bf16 %v370, %v366
    %v666 = vpack.c.bf16 %v265, %v261
    %v667 = vpack.c.bf16 %v267, %v263
    %v668 = vpack.c.bf16 %v378, %v374
    %v669 = vpack.c.bf16 %v380, %v376
    %v670 = vpack.c.bf16 %v275, %v271
    %v671 = vpack.c.bf16 %v277, %v273
    %v672 = vpack.c.bf16 %v388, %v384
    %v673 = vpack.c.bf16 %v390, %v386
    %v674 = vpack.c.bf16 %v285, %v281
    %v675 = vpack.c.bf16 %v287, %v283
    %v676 = vpack.c.bf16 %v398, %v394
    %v677 = vpack.c.bf16 %v400, %v396
    %v678 = vpack.c.bf16 %v295, %v291
    %v679 = vpack.c.bf16 %v297, %v293
    %v680 = vpack.c.bf16 %v408, %v404
    %v681 = vpack.c.bf16 %v410, %v406
    %v682 = vpack.c.bf16 %v305, %v301
    %v683 = vpack.c.bf16 %v307, %v303
    %v684 = vpack.c.bf16 %v418, %v414
    %v685 = vpack.c.bf16 %v420, %v416
    %v686 = vpack.c.bf16 %v315, %v311
    %v687 = vpack.c.bf16 %v317, %v313
    %v688 = vpack.c.bf16 %v428, %v424
    %v689 = vpack.c.bf16 %v430, %v426
    %v722 = vunpack.c.l.b16 %v658
    %v723 = vunpack.c.l.b16 %v659
    %v724 = vunpack.c.l.b16 %v660
    %v725 = vunpack.c.l.b16 %v661
    %v726 = vunpack.c.h.b16 %v658
    %v727 = vunpack.c.h.b16 %v659
    %v728 = vunpack.c.h.b16 %v660
    %v729 = vunpack.c.h.b16 %v661
    %v730 = vunpack.c.l.b16 %v662
    %v731 = vunpack.c.l.b16 %v663
    %v732 = vunpack.c.l.b16 %v664
    %v733 = vunpack.c.l.b16 %v665
    %v734 = vunpack.c.h.b16 %v662
    %v735 = vunpack.c.h.b16 %v663
    %v736 = vunpack.c.h.b16 %v664
    %v737 = vunpack.c.h.b16 %v665
    %v738 = vunpack.c.l.b16 %v666
    %v739 = vunpack.c.l.b16 %v667
    %v740 = vunpack.c.l.b16 %v668
    %v741 = vunpack.c.l.b16 %v669
    %v742 = vunpack.c.h.b16 %v666
    %v743 = vunpack.c.h.b16 %v667
    %v744 = vunpack.c.h.b16 %v668
    %v745 = vunpack.c.h.b16 %v669
    %v746 = vunpack.c.l.b16 %v670
    %v747 = vunpack.c.l.b16 %v671
    %v748 = vunpack.c.l.b16 %v672
    %v749 = vunpack.c.l.b16 %v673
    %v750 = vunpack.c.h.b16 %v670
    %v751 = vunpack.c.h.b16 %v671
    %v752 = vunpack.c.h.b16 %v672
    %v753 = vunpack.c.h.b16 %v673
    %v754 = vunpack.c.l.b16 %v674
    %v755 = vunpack.c.l.b16 %v675
    %v756 = vunpack.c.l.b16 %v676
    %v757 = vunpack.c.l.b16 %v677
    %v758 = vunpack.c.h.b16 %v674
    %v759 = vunpack.c.h.b16 %v675
    %v760 = vunpack.c.h.b16 %v676
    %v761 = vunpack.c.h.b16 %v677
    %v762 = vunpack.c.l.b16 %v678
    %v763 = vunpack.c.l.b16 %v679
    %v764 = vunpack.c.l.b16 %v680
    %v765 = vunpack.c.l.b16 %v681
    %v766 = vunpack.c.h.b16 %v678
    %v767 = vunpack.c.h.b16 %v679
    %v768 = vunpack.c.h.b16 %v680
    %v769 = vunpack.c.h.b16 %v681
    %v770 = vunpack.c.l.b16 %v682
    %v771 = vunpack.c.l.b16 %v683
    %v772 = vunpack.c.l.b16 %v684
    %v773 = vunpack.c.l.b16 %v685
    %v774 = vunpack.c.h.b16 %v682
    %v775 = vunpack.c.h.b16 %v683
    %v776 = vunpack.c.h.b16 %v684
    %v777 = vunpack.c.h.b16 %v685
    %v778 = vunpack.c.l.b16 %v686
    %v779 = vunpack.c.l.b16 %v687
    %v780 = vunpack.c.l.b16 %v688
    %v781 = vunpack.c.l.b16 %v689
    %v782 = vunpack.c.h.b16 %v686
    %v783 = vunpack.c.h.b16 %v687
    %v784 = vunpack.c.h.b16 %v688
    %v785 = vunpack.c.h.b16 %v689
    %v786 = vpack.c.b16 %v723, %v722
    %v787 = vpack.c.b16 %v725, %v724
    %v788 = vpack.c.b16 %v727, %v726
    %v789 = vpack.c.b16 %v729, %v728
    %v790 = vpack.c.b16 %v731, %v730
    %v791 = vpack.c.b16 %v733, %v732
    %v792 = vpack.c.b16 %v735, %v734
    %v793 = vpack.c.b16 %v737, %v736
    %v794 = vpack.c.b16 %v739, %v738
    %v795 = vpack.c.b16 %v741, %v740
    %v796 = vpack.c.b16 %v743, %v742
    %v797 = vpack.c.b16 %v745, %v744
    %v798 = vpack.c.b16 %v747, %v746
    %v799 = vpack.c.b16 %v749, %v748
    %v800 = vpack.c.b16 %v751, %v750
    %v801 = vpack.c.b16 %v753, %v752
    %v802 = vpack.c.b16 %v755, %v754
    %v803 = vpack.c.b16 %v757, %v756
    %v804 = vpack.c.b16 %v759, %v758
    %v805 = vpack.c.b16 %v761, %v760
    %v806 = vpack.c.b16 %v763, %v762
    %v807 = vpack.c.b16 %v765, %v764
    %v808 = vpack.c.b16 %v767, %v766
    %v809 = vpack.c.b16 %v769, %v768
    %v810 = vpack.c.b16 %v771, %v770
    %v811 = vpack.c.b16 %v773, %v772
    %v812 = vpack.c.b16 %v775, %v774
    %v813 = vpack.c.b16 %v777, %v776
    %v814 = vpack.c.b16 %v779, %v778
    %v815 = vpack.c.b16 %v781, %v780
    %v816 = vpack.c.b16 %v783, %v782
    %v817 = vpack.c.b16 %v785, %v784
    %850 = vst [vmem:[#allocation2] sm:$0xff] %v786
    %851 = vst [vmem:[#allocation2 + $0x8] sm:$0xff] %v787
    %852 = vst [vmem:[#allocation2 + $0x10] sm:$0xff] %v788
    %853 = vst [vmem:[#allocation2 + $0x18] sm:$0xff] %v789
    %854 = vst [vmem:[#allocation2 + $0x20] sm:$0xff] %v790
    %855 = vst [vmem:[#allocation2 + $0x28] sm:$0xff] %v791
    %856 = vst [vmem:[#allocation2 + $0x30] sm:$0xff] %v792
    %857 = vst [vmem:[#allocation2 + $0x38] sm:$0xff] %v793
    %858 = vst [vmem:[#allocation2 + $0x40] sm:$0xff] %v794
    %859 = vst [vmem:[#allocation2 + $0x48] sm:$0xff] %v795
    %860 = vst [vmem:[#allocation2 + $0x50] sm:$0xff] %v796
    %861 = vst [vmem:[#allocation2 + $0x58] sm:$0xff] %v797
    %862 = vst [vmem:[#allocation2 + $0x60] sm:$0xff] %v798
    %863 = vst [vmem:[#allocation2 + $0x68] sm:$0xff] %v799
    %864 = vst [vmem:[#allocation2 + $0x70] sm:$0xff] %v800
    %865 = vst [vmem:[#allocation2 + $0x78] sm:$0xff] %v801
    %866 = vst [vmem:[#allocation2 + $0x80] sm:$0xff] %v802
    %867 = vst [vmem:[#allocation2 + $0x88] sm:$0xff] %v803
    %868 = vst [vmem:[#allocation2 + $0x90] sm:$0xff] %v804
    %869 = vst [vmem:[#allocation2 + $0x98] sm:$0xff] %v805
    %870 = vst [vmem:[#allocation2 + $0xa0] sm:$0xff] %v806
    %871 = vst [vmem:[#allocation2 + $0xa8] sm:$0xff] %v807
    %872 = vst [vmem:[#allocation2 + $0xb0] sm:$0xff] %v808
    %873 = vst [vmem:[#allocation2 + $0xb8] sm:$0xff] %v809
    %874 = vst [vmem:[#allocation2 + $0xc0] sm:$0xff] %v810
    %875 = vst [vmem:[#allocation2 + $0xc8] sm:$0xff] %v811
    %876 = vst [vmem:[#allocation2 + $0xd0] sm:$0xff] %v812
    %877 = vst [vmem:[#allocation2 + $0xd8] sm:$0xff] %v813
    %878 = vst [vmem:[#allocation2 + $0xe0] sm:$0xff] %v814
    %879 = vst [vmem:[#allocation2 + $0xe8] sm:$0xff] %v815
    %880 = vst [vmem:[#allocation2 + $0xf0] sm:$0xff] %v816
    %881 = vst [vmem:[#allocation2 + $0xf8] sm:$0xff] %v817
    %v882 = vpack.c.bf16 %v471, %v467
    %v883 = vpack.c.bf16 %v473, %v469
    %v884 = vpack.c.bf16 %v584, %v580
    %v885 = vpack.c.bf16 %v586, %v582
    %v886 = vpack.c.bf16 %v481, %v477
    %v887 = vpack.c.bf16 %v483, %v479
    %v888 = vpack.c.bf16 %v594, %v590
    %v889 = vpack.c.bf16 %v596, %v592
    %v890 = vpack.c.bf16 %v491, %v487
    %v891 = vpack.c.bf16 %v493, %v489
    %v892 = vpack.c.bf16 %v604, %v600
    %v893 = vpack.c.bf16 %v606, %v602
    %v894 = vpack.c.bf16 %v501, %v497
    %v895 = vpack.c.bf16 %v503, %v499
    %v896 = vpack.c.bf16 %v614, %v610
    %v897 = vpack.c.bf16 %v616, %v612
    %v898 = vpack.c.bf16 %v511, %v507
    %v899 = vpack.c.bf16 %v513, %v509
    %v900 = vpack.c.bf16 %v624, %v620
    %v901 = vpack.c.bf16 %v626, %v622
    %v902 = vpack.c.bf16 %v521, %v517
    %v903 = vpack.c.bf16 %v523, %v519
    %v904 = vpack.c.bf16 %v634, %v630
    %v905 = vpack.c.bf16 %v636, %v632
    %v906 = vpack.c.bf16 %v531, %v527
    %v907 = vpack.c.bf16 %v533, %v529
    %v908 = vpack.c.bf16 %v644, %v640
    %v909 = vpack.c.bf16 %v646, %v642
    %v910 = vpack.c.bf16 %v541, %v537
    %v911 = vpack.c.bf16 %v543, %v539
    %v912 = vpack.c.bf16 %v654, %v650
    %v913 = vpack.c.bf16 %v656, %v652
    %v946 = vunpack.c.l.b16 %v882
    %v947 = vunpack.c.l.b16 %v883
    %v948 = vunpack.c.l.b16 %v884
    %v949 = vunpack.c.l.b16 %v885
    %v950 = vunpack.c.h.b16 %v882
    %v951 = vunpack.c.h.b16 %v883
    %v952 = vunpack.c.h.b16 %v884
    %v953 = vunpack.c.h.b16 %v885
    %v954 = vunpack.c.l.b16 %v886
    %v955 = vunpack.c.l.b16 %v887
    %v956 = vunpack.c.l.b16 %v888
    %v957 = vunpack.c.l.b16 %v889
    %v958 = vunpack.c.h.b16 %v886
    %v959 = vunpack.c.h.b16 %v887
    %v960 = vunpack.c.h.b16 %v888
    %v961 = vunpack.c.h.b16 %v889
    %v962 = vunpack.c.l.b16 %v890
    %v963 = vunpack.c.l.b16 %v891
    %v964 = vunpack.c.l.b16 %v892
    %v965 = vunpack.c.l.b16 %v893
    %v966 = vunpack.c.h.b16 %v890
    %v967 = vunpack.c.h.b16 %v891
    %v968 = vunpack.c.h.b16 %v892
    %v969 = vunpack.c.h.b16 %v893
    %v970 = vunpack.c.l.b16 %v894
    %v971 = vunpack.c.l.b16 %v895
    %v972 = vunpack.c.l.b16 %v896
    %v973 = vunpack.c.l.b16 %v897
    %v974 = vunpack.c.h.b16 %v894
    %v975 = vunpack.c.h.b16 %v895
    %v976 = vunpack.c.h.b16 %v896
    %v977 = vunpack.c.h.b16 %v897
    %v978 = vunpack.c.l.b16 %v898
    %v979 = vunpack.c.l.b16 %v899
    %v980 = vunpack.c.l.b16 %v900
    %v981 = vunpack.c.l.b16 %v901
    %v982 = vunpack.c.h.b16 %v898
    %v983 = vunpack.c.h.b16 %v899
    %v984 = vunpack.c.h.b16 %v900
    %v985 = vunpack.c.h.b16 %v901
    %v986 = vunpack.c.l.b16 %v902
    %v987 = vunpack.c.l.b16 %v903
    %v988 = vunpack.c.l.b16 %v904
    %v989 = vunpack.c.l.b16 %v905
    %v990 = vunpack.c.h.b16 %v902
    %v991 = vunpack.c.h.b16 %v903
    %v992 = vunpack.c.h.b16 %v904
    %v993 = vunpack.c.h.b16 %v905
    %v994 = vunpack.c.l.b16 %v906
    %v995 = vunpack.c.l.b16 %v907
    %v996 = vunpack.c.l.b16 %v908
    %v997 = vunpack.c.l.b16 %v909
    %v998 = vunpack.c.h.b16 %v906
    %v999 = vunpack.c.h.b16 %v907
    %v1000 = vunpack.c.h.b16 %v908
    %v1001 = vunpack.c.h.b16 %v909
    %v1002 = vunpack.c.l.b16 %v910
    %v1003 = vunpack.c.l.b16 %v911
    %v1004 = vunpack.c.l.b16 %v912
    %v1005 = vunpack.c.l.b16 %v913
    %v1006 = vunpack.c.h.b16 %v910
    %v1007 = vunpack.c.h.b16 %v911
    %v1008 = vunpack.c.h.b16 %v912
    %v1009 = vunpack.c.h.b16 %v913
    %v1010 = vpack.c.b16 %v947, %v946
    %v1011 = vpack.c.b16 %v949, %v948
    %v1012 = vpack.c.b16 %v951, %v950
    %v1013 = vpack.c.b16 %v953, %v952
    %v1014 = vpack.c.b16 %v955, %v954
    %v1015 = vpack.c.b16 %v957, %v956
    %v1016 = vpack.c.b16 %v959, %v958
    %v1017 = vpack.c.b16 %v961, %v960
    %v1018 = vpack.c.b16 %v963, %v962
    %v1019 = vpack.c.b16 %v965, %v964
    %v1020 = vpack.c.b16 %v967, %v966
    %v1021 = vpack.c.b16 %v969, %v968
    %v1022 = vpack.c.b16 %v971, %v970
    %v1023 = vpack.c.b16 %v973, %v972
    %v1024 = vpack.c.b16 %v975, %v974
    %v1025 = vpack.c.b16 %v977, %v976
    %v1026 = vpack.c.b16 %v979, %v978
    %v1027 = vpack.c.b16 %v981, %v980
    %v1028 = vpack.c.b16 %v983, %v982
    %v1029 = vpack.c.b16 %v985, %v984
    %v1030 = vpack.c.b16 %v987, %v986
    %v1031 = vpack.c.b16 %v989, %v988
    %v1032 = vpack.c.b16 %v991, %v990
    %v1033 = vpack.c.b16 %v993, %v992
    %v1034 = vpack.c.b16 %v995, %v994
    %v1035 = vpack.c.b16 %v997, %v996
    %v1036 = vpack.c.b16 %v999, %v998
    %v1037 = vpack.c.b16 %v1001, %v1000
    %v1038 = vpack.c.b16 %v1003, %v1002
    %v1039 = vpack.c.b16 %v1005, %v1004
    %v1040 = vpack.c.b16 %v1007, %v1006
    %v1041 = vpack.c.b16 %v1009, %v1008
    %1074 = vst [vmem:[#allocation4] sm:$0xff] %v1010
    %1075 = vst [vmem:[#allocation4 + $0x8] sm:$0xff] %v1011
    %1076 = vst [vmem:[#allocation4 + $0x10] sm:$0xff] %v1012
    %1077 = vst [vmem:[#allocation4 + $0x18] sm:$0xff] %v1013
    %1078 = vst [vmem:[#allocation4 + $0x20] sm:$0xff] %v1014
    %1079 = vst [vmem:[#allocation4 + $0x28] sm:$0xff] %v1015
    %1080 = vst [vmem:[#allocation4 + $0x30] sm:$0xff] %v1016
    %1081 = vst [vmem:[#allocation4 + $0x38] sm:$0xff] %v1017
    %1082 = vst [vmem:[#allocation4 + $0x40] sm:$0xff] %v1018
    %1083 = vst [vmem:[#allocation4 + $0x48] sm:$0xff] %v1019
    %1084 = vst [vmem:[#allocation4 + $0x50] sm:$0xff] %v1020
    %1085 = vst [vmem:[#allocation4 + $0x58] sm:$0xff] %v1021
    %1086 = vst [vmem:[#allocation4 + $0x60] sm:$0xff] %v1022
    %1087 = vst [vmem:[#allocation4 + $0x68] sm:$0xff] %v1023
    %1088 = vst [vmem:[#allocation4 + $0x70] sm:$0xff] %v1024
    %1089 = vst [vmem:[#allocation4 + $0x78] sm:$0xff] %v1025
    %1090 = vst [vmem:[#allocation4 + $0x80] sm:$0xff] %v1026
    %1091 = vst [vmem:[#allocation4 + $0x88] sm:$0xff] %v1027
    %1092 = vst [vmem:[#allocation4 + $0x90] sm:$0xff] %v1028
    %1093 = vst [vmem:[#allocation4 + $0x98] sm:$0xff] %v1029
    %1094 = vst [vmem:[#allocation4 + $0xa0] sm:$0xff] %v1030
    %1095 = vst [vmem:[#allocation4 + $0xa8] sm:$0xff] %v1031
    %1096 = vst [vmem:[#allocation4 + $0xb0] sm:$0xff] %v1032
    %1097 = vst [vmem:[#allocation4 + $0xb8] sm:$0xff] %v1033
    %1098 = vst [vmem:[#allocation4 + $0xc0] sm:$0xff] %v1034
    %1099 = vst [vmem:[#allocation4 + $0xc8] sm:$0xff] %v1035
    %1100 = vst [vmem:[#allocation4 + $0xd0] sm:$0xff] %v1036
    %1101 = vst [vmem:[#allocation4 + $0xd8] sm:$0xff] %v1037
    %1102 = vst [vmem:[#allocation4 + $0xe0] sm:$0xff] %v1038
    %1103 = vst [vmem:[#allocation4 + $0xe8] sm:$0xff] %v1039
    %1104 = vst [vmem:[#allocation4 + $0xf0] sm:$0xff] %v1040
    %1105 = vst [vmem:[#allocation4 + $0xf8] sm:$0xff] %v1041
    // Predicated region
    $region14: #{tpu_custom_call.1} parent=1 // pred_check
      _
    $region15: #{tpu_custom_call.1} parent=1 // pred_check_branch
      %1107 = sbr.rel (0) target = $region17
    $region16: #{tpu_custom_call.1} parent=1 // pred_region
      %s1109 = ssub.s32 4096, 4096
      %1110 = vsyncadd [#allocation3], %s1109
      %s1111 = sshll.u32 [#allocation2], 4
      %s1112 = int_to_ptr.vmem [resolvable:$true] %s1111
      %1117 = dma.vmem_to_hbm [thread:$0]  %s1112, 4096, %s3, [#allocation3], 256, 256, 16
    $region17: #{tpu_custom_call.1} parent=1 // pred_fallthru
      _
    // Predicated region
    $region18: #{tpu_custom_call.1} parent=1 // pred_check
      _
    $region19: #{tpu_custom_call.1} parent=1 // pred_check_branch
      %1119 = sbr.rel (0) target = $region21
    $region20: #{tpu_custom_call.1} parent=1 // pred_region
      %s1121 = ssub.s32 4096, 4096
      %1122 = vsyncadd [#allocation5], %s1121
      %s1123 = sshll.u32 [#allocation4], 4
      %s1124 = int_to_ptr.vmem [resolvable:$true] %s1123
      %1129 = dma.vmem_to_hbm [thread:$0]  %s1124, 4096, %s4, [#allocation5], 256, 256, 16
    $region21: #{tpu_custom_call.1} parent=1 // pred_fallthru
      _
    // Predicated region
    $region22: #{tpu_custom_call.1} parent=1 // pred_check
      _
    $region23: #{tpu_custom_call.1} parent=1 // pred_check_branch
      %1131 = sbr.rel (0) target = $region25
    $region24: #{tpu_custom_call.1} parent=1 // pred_region
      %1132 = dma.done [#allocation3], 4096
    $region25: #{tpu_custom_call.1} parent=1 // pred_fallthru
      _
    // Predicated region
    $region26: #{tpu_custom_call.1} parent=1 // pred_check
      _
    $region27: #{tpu_custom_call.1} parent=1 // pred_check_branch
      %1134 = sbr.rel (0) target = $region29
    $region28: #{tpu_custom_call.1} parent=1 // pred_region
      %1135 = dma.done [#allocation5], 4096
    $region29: #{tpu_custom_call.1} parent=1 // pred_fallthru
      _
    %1136 = vsyncpa [#allocation3], 1
    %1137 = vsyncpa [#allocation5], 1

</llo_original>
